<compile_context>
chip_gen: v6e
topology: v6e:2x2x1
jax: 0.10.0
libtpu: 0.0.40
codegen_flags: <defaults>
</compile_context>

<pallas_src>
import jax
import jax.numpy as jnp
from jax import lax
from jax.experimental import pallas as pl
from jax.experimental.pallas import tpu as pltpu

# Deterministic stand-ins for tokens.TokenCls enum values (no file/checkpoint load).
PAD_VALUE = 0   # tokens.TokenCls.PAD.value
COO_VALUE = 1   # tokens.TokenCls.COO.value


def _round_up(x: int, m: int) -> int:
    return ((x + m - 1) // m) * m


def _vmem_capacity_bytes() -> int:
    try:
        cap = int(pltpu.get_tpu_info().vmem_capacity_bytes)
        if cap > 0:
            return cap
    except Exception:
        pass
    return 64 * 1024 * 1024  # conservative (v7x per-TC)


def _tensorcores_per_chip() -> int:
    try:
        kind = jax.devices()[0].device_kind.lower()
        if "v7" in kind:
            return 2
    except Exception:
        pass
    return 1


def _make_kernel(*, sub: int, nsub: int, red_axis: int):
    """Builds the reduction kernel.

    Inputs per grid step: logits tile (tm, C) [native dtype], packed side tile
    (tm, 8) f32 with columns [tgt, pc_x, pc_y, tc_x, tc_y, 0, 0, 0].
    Accumulates [ce_sum, ce_cnt, l1_sum, l1_cnt] into SMEM scalars; writes the
    lane-dense (1, 8, 128) output block once at the last reduction step.
    """

    def kernel(logits_ref, side_ref, out_ref, acc_ref):
        j = pl.program_id(red_axis)

        @pl.when(j == 0)
        def _init():
            for t in range(4):
                acc_ref[t] = jnp.float32(0.0)

        def chunk(s, carry):
            ce_s, ce_c, l1_s, l1_c = carry
            start = s * sub
            if not isinstance(start, int):
                start = pl.multiple_of(start, sub)
            logits = logits_ref[pl.ds(start, sub), :].astype(jnp.float32)  # (sub, C)
            side = side_ref[pl.ds(start, sub), :]                          # (sub, 8) f32
            tgt = side[:, 0:1].astype(jnp.int32)                           # (sub, 1)
            pc = side[:, 1:3]                                              # (sub, 2)
            tc = side[:, 3:5]                                              # (sub, 2)

            # ---- masked cross entropy partials (sum of NLL over non-PAD rows) ----
            m = jnp.max(logits, axis=-1, keepdims=True)
            shifted = logits - m
            lse = jnp.log(jnp.sum(jnp.exp(shifted), axis=-1, keepdims=True))  # (sub, 1)
            col = jax.lax.broadcasted_iota(jnp.int32, logits.shape, 1)
            valid_b = tgt != PAD_VALUE
            valid_f = valid_b.astype(jnp.float32)
            # valid mask folded directly into the full reduction (no (sub,1) nll temp)
            sel = jnp.where((col == tgt) & valid_b, shifted, 0.0)
            ce_s = ce_s + (jnp.sum(lse * valid_f) - jnp.sum(sel))
            ce_c = ce_c + jnp.sum(valid_f)

            # ---- masked L1 partials over rows whose class token == COO ----
            coo_f = (tgt == COO_VALUE).astype(jnp.float32)
            l1_s = l1_s + jnp.sum(jnp.abs(pc - tc) * coo_f)
            l1_c = l1_c + jnp.sum(coo_f) * 2.0
            return ce_s, ce_c, l1_s, l1_c

        zero = jnp.float32(0.0)
        init = (zero, zero, zero, zero)
        if nsub == 1:
            ce_s, ce_c, l1_s, l1_c = chunk(0, init)
        else:
            ce_s, ce_c, l1_s, l1_c = lax.fori_loop(0, nsub, chunk, init)

        acc_ref[0] = acc_ref[0] + ce_s
        acc_ref[1] = acc_ref[1] + ce_c
        acc_ref[2] = acc_ref[2] + l1_s
        acc_ref[3] = acc_ref[3] + l1_c

        @pl.when(j == pl.num_programs(red_axis) - 1)
        def _finalize():
            lane = jax.lax.broadcasted_iota(jnp.int32, out_ref.shape, out_ref.ndim - 1)
            out_ref[...] = (jnp.where(lane == 0, acc_ref[0], 0.0)
                            + jnp.where(lane == 1, acc_ref[1], 0.0)
                            + jnp.where(lane == 2, acc_ref[2], 0.0)
                            + jnp.where(lane == 3, acc_ref[3], 0.0))

    return kernel


def _choose_tiling(BN, C, itemsize, nc, tm, sub):
    per_core_rows = _round_up(max(1, -(-BN // nc)), 8)

    vmem_cap = _vmem_capacity_bytes()
    if vmem_cap >= 100 * 1024 * 1024:
        # 128-MiB-VMEM parts (v5e / v6e): bigger DMA tiles, higher limit.
        tile_budget = 12 * 1024 * 1024
        vmem_limit = 100 * 1024 * 1024
    else:
        # v7x: 64 MiB per TensorCore -> keep double-buffered DMA tiles modest.
        tile_budget = 4 * 1024 * 1024
        vmem_limit = 48 * 1024 * 1024

    # DMA tile rows (tm): sized purely from the byte budget -- no artificial cap.
    if tm is None:
        tm = tile_budget // max(1, C * itemsize)
    tm = max(8, min(int(tm), _round_up(per_core_rows, 8)))
    tm = max(8, (tm // 8) * 8)

    # Sub-chunk rows: bound live f32 intermediates (~5x sub*C*4 bytes).
    if sub is None:
        sub = (1024 * 1024) // max(1, C * 4)
    sub = max(8, min(512, tm, (int(sub) // 8) * 8))

    tm = max(sub, (tm // sub) * sub)  # tm must be a multiple of sub
    return tm, sub, vmem_limit


def _call(logits, side, nc, tm, sub, nsub, tiles_per_core, vmem_limit, core_parallel):
    C = logits.shape[1]
    if nc == 1:
        grid = (tiles_per_core,)
        in_specs = [
            pl.BlockSpec((tm, C), lambda j: (j, 0)),
            pl.BlockSpec((tm, 8), lambda j: (j, 0)),
        ]
        out_specs = pl.BlockSpec((1, 8, 128), lambda j: (0, 0, 0))
        sem = ("arbitrary",)
        red_axis = 0
    else:
        grid = (nc, tiles_per_core)
        row_map = lambda c, j: (c * tiles_per_core + j, 0)
        in_specs = [
            pl.BlockSpec((tm, C), row_map),
            pl.BlockSpec((tm, 8), row_map),
        ]
        out_specs = pl.BlockSpec((1, 8, 128), lambda c, j: (c, 0, 0))
        core_sem = getattr(pltpu, "CORE_PARALLEL", None) if core_parallel else None
        arb_sem = getattr(pltpu, "ARBITRARY", "arbitrary")
        sem = (core_sem if core_sem is not None else "parallel",
               arb_sem if core_sem is not None else "arbitrary")
        red_axis = 1

    kernel = _make_kernel(sub=sub, nsub=nsub, red_axis=red_axis)
    return pl.pallas_call(
        kernel,
        grid_spec=pltpu.PrefetchScalarGridSpec(
            num_scalar_prefetch=0,
            grid=grid,
            in_specs=in_specs,
            out_specs=out_specs,
            scratch_shapes=[pltpu.SMEM((4,), jnp.float32)],
        ),
        out_shape=jax.ShapeDtypeStruct((nc, 8, 128), jnp.float32),
        compiler_params=pltpu.CompilerParams(
            dimension_semantics=sem,
            vmem_limit_bytes=vmem_limit,
        ),
    )(logits, side)


def total_loss(pred_cls, pred_coord, target_cls, target_coord,
               cls_coef: float, coord_coef: float,
               *, tm: int | None = None, sub: int | None = None, nc: int | None = None):
    """JAX/Pallas equivalent of TotalLoss.forward.

    pred_cls:     (B, N, C) float logits (f32 or bf16)
    pred_coord:   (B, N, 2) float
    target_cls:   (B, N)    int
    target_coord: (B, N, 2) float
    Returns dict with scaled 'cls', 'coord', 'total' scalar losses (float32).
    """
    B, N, C = pred_cls.shape
    BN = B * N
    logits = pred_cls.reshape(BN, C)  # keep native dtype (bf16 stays bf16 on the DMA)
    # Pack the lane-sparse side inputs into one (BN, 8) f32 slab:
    # [tgt, pc_x, pc_y, tc_x, tc_y, 0, 0, 0]  (class ids are exact in f32 for C < 2^24)
    tgt = target_cls.reshape(BN, 1).astype(jnp.float32)
    pc = pred_coord.reshape(BN, 2).astype(jnp.float32)
    tc = target_coord.reshape(BN, 2).astype(jnp.float32)
    side = jnp.concatenate([tgt, pc, tc, jnp.zeros((BN, 3), jnp.float32)], axis=-1)

    if nc is None:
        nc = _tensorcores_per_chip()
    itemsize = jnp.dtype(logits.dtype).itemsize

    def run(nc_, core_parallel):
        tm_, sub_, vmem_limit = _choose_tiling(BN, C, itemsize, nc_, tm, sub)
        nsub = tm_ // sub_
        chunk = tm_ * nc_
        bn_pad = _round_up(BN, chunk)
        lg, sd = logits, side
        if bn_pad != BN:
            pad = bn_pad - BN
            lg = jnp.pad(lg, ((0, pad), (0, 0)))
            # Padded rows get PAD targets so they contribute 0 to both masked sums.
            pad_side = jnp.zeros((pad, 8), jnp.float32).at[:, 0].set(jnp.float32(PAD_VALUE))
            sd = jnp.concatenate([sd, pad_side], axis=0)
        tiles_per_core = bn_pad // chunk
        return _call(lg, sd, nc_, tm_, sub_, nsub, tiles_per_core, vmem_limit, core_parallel)

    partial = None
    if nc > 1:
        # v7-class chips: try explicit core-parallel sharding of the outer axis;
        # fall back to the single-core path if that lowering is rejected.
        try:
            partial = jax.block_until_ready(run(nc, True))
        except Exception:
            partial = None
    if partial is None:
        partial = run(1, False)

    sums = jnp.sum(partial[:, 0, 0:4], axis=0)              # combine per-core partials
    ce_sum, ce_cnt, l1_sum, l1_cnt = sums[0], sums[1], sums[2], sums[3]

    # NOTE: divisions intentionally unguarded to match nn.CrossEntropyLoss /
    # F.l1_loss semantics when the mask selects zero elements (PyTorch -> NaN).
    cls_loss = ce_sum / ce_cnt                               # CE mean over non-PAD tokens
    coord_loss = l1_sum / l1_cnt                             # L1 mean over (num_coo, 2)

    cls_scaled = cls_loss * cls_coef
    coord_scaled = coord_loss * coord_coef
    total = cls_scaled + coord_scaled
    return {"cls": cls_scaled, "coord": coord_scaled, "total": total}


def _reference(pred_cls, pred_coord, target_cls, target_coord, cls_coef, coord_coef):
    """Plain-JAX reference mirroring the PyTorch module semantics."""
    logp = jax.nn.log_softmax(pred_cls.astype(jnp.float32), axis=-1)
    nll = -jnp.take_along_axis(logp, target_cls[..., None].astype(jnp.int32), axis=-1)[..., 0]
    valid = (target_cls != PAD_VALUE).astype(jnp.float32)
    cls_loss = jnp.sum(nll * valid) / jnp.sum(valid)
    coo = (target_cls == COO_VALUE).astype(jnp.float32)
    coord_loss = jnp.sum(jnp.abs(pred_coord - target_coord) * coo[..., None]) / (jnp.sum(coo) * 2.0)
    cls_s = cls_loss * cls_coef
    coo_s = coord_loss * coord_coef
    return {"cls": cls_s, "coord": coo_s, "total": cls_s + coo_s}


if __name__ == "__main__":
    # TODO(synk): targets outside [0, C) (other than PAD) are silently treated as
    # "no target logit" instead of raising like PyTorch's CrossEntropyLoss.
    B, N, C = 2, 24, 48
    cls_coef, coord_coef = 1.0, 5.0

    key = jax.random.PRNGKey(0)
    k1, k2, k3 = jax.random.split(key, 3)
    pred_cls = jax.random.normal(k1, (B, N, C), dtype=jnp.float32)
    pred_coord = jax.random.normal(k2, (B, N, 2), dtype=jnp.float32)
    target_coord = jax.random.normal(k3, (B, N, 2), dtype=jnp.float32)
    # Deterministic targets guaranteed to contain PAD(0), COO(1) and another class(2).
    target_cls = (jnp.arange(B * N, dtype=jnp.int32) % 3).reshape(B, N)

    ref = _reference(pred_cls, pred_coord, target_cls, target_coord, cls_coef, coord_coef)

    outs = [
        # multi-tile reduction path (several grid steps)
        total_loss(pred_cls, pred_coord, target_cls, target_coord,
                   cls_coef, coord_coef, tm=8),
        # sub-chunked inner loop path (nsub > 1 exercises the fori_loop)
        total_loss(pred_cls, pred_coord, target_cls, target_coord,
                   cls_coef, coord_coef, tm=16, sub=8),
        # auto-tiled path
        total_loss(pred_cls, pred_coord, target_cls, target_coord,
                   cls_coef, coord_coef),
    ]
    for out in outs:
        out = jax.block_until_ready(out)
        for name in ("cls", "coord", "total"):
            assert jnp.allclose(out[name], ref[name], rtol=1e-5, atol=1e-5), (
                name, out[name], ref[name])

    print("KERNEL_OK")
</pallas_src>

<mosaic_0001>
module attributes {stable_mosaic.version = 11 : i64} {
  func.func @kernel(%arg0: i32, %arg1: memref<8x48xf32, #tpu.memory_space<vmem>>, %arg2: memref<8x8xf32, #tpu.memory_space<vmem>>, %arg3: memref<1x8x128xf32, #tpu.memory_space<vmem>>, %arg4: memref<4xf32, #tpu.memory_space<smem>>) attributes {dimension_semantics = [#tpu.dimension_semantics<arbitrary>], iteration_bounds = array<i64: 6>, scalar_prefetch = 0 : i64, scratch_operands = 1 : i64, tpu.core_type = #tpu.core_type<tc>, window_params = [{transform_indices = @transform_0, window_bounds = array<i64: 8, 48>}, {transform_indices = @transform_1, window_bounds = array<i64: 8, 8>}, {pipeline_mode = #tpu.pipeline_mode<synchronous>, transform_indices = @transform_2, window_bounds = array<i64: 1, 8, 128>}]} {
    %c0_i32 = arith.constant 0 : i32
    %0 = arith.cmpi eq, %arg0, %c0_i32 : i32
    %1 = arith.extui %0 : i1 to i32
    %c0_i32_0 = arith.constant 0 : i32
    %2 = arith.cmpi ne, %1, %c0_i32_0 : i32
    scf.if %2 {
      %cst_23 = arith.constant 0.000000e+00 : f32
      %c0_24 = arith.constant 0 : index
      %78 = memref.load %arg4[%c0_24] : memref<4xf32, #tpu.memory_space<smem>>
      memref.store %cst_23, %arg4[%c0_24] : memref<4xf32, #tpu.memory_space<smem>>
      %cst_25 = arith.constant 0.000000e+00 : f32
      %c1_26 = arith.constant 1 : index
      %79 = memref.load %arg4[%c1_26] : memref<4xf32, #tpu.memory_space<smem>>
      memref.store %cst_25, %arg4[%c1_26] : memref<4xf32, #tpu.memory_space<smem>>
      %cst_27 = arith.constant 0.000000e+00 : f32
      %c2_28 = arith.constant 2 : index
      %80 = memref.load %arg4[%c2_28] : memref<4xf32, #tpu.memory_space<smem>>
      memref.store %cst_27, %arg4[%c2_28] : memref<4xf32, #tpu.memory_space<smem>>
      %cst_29 = arith.constant 0.000000e+00 : f32
      %c3_30 = arith.constant 3 : index
      %81 = memref.load %arg4[%c3_30] : memref<4xf32, #tpu.memory_space<smem>>
      memref.store %cst_29, %arg4[%c3_30] : memref<4xf32, #tpu.memory_space<smem>>
    } else {
    }
    %c0 = arith.constant 0 : index
    %c0_1 = arith.constant 0 : index
    %3 = vector.load %arg1[%c0, %c0_1] : memref<8x48xf32, #tpu.memory_space<vmem>>, vector<8x48xf32>
    %c0_2 = arith.constant 0 : index
    %c0_3 = arith.constant 0 : index
    %4 = vector.load %arg2[%c0_2, %c0_3] : memref<8x8xf32, #tpu.memory_space<vmem>>, vector<8x8xf32>
    %5 = vector.extract_strided_slice %4 {offsets = [0, 0], sizes = [8, 1], strides = [1, 1]} : vector<8x8xf32> to vector<8x1xf32>
    %6 = arith.fptosi %5 : vector<8x1xf32> to vector<8x1xi32>
    %7 = vector.extract_strided_slice %4 {offsets = [0, 1], sizes = [8, 2], strides = [1, 1]} : vector<8x8xf32> to vector<8x2xf32>
    %8 = vector.extract_strided_slice %4 {offsets = [0, 3], sizes = [8, 2], strides = [1, 1]} : vector<8x8xf32> to vector<8x2xf32>
    %cst = arith.constant dense<0xFF800000> : vector<8xf32>
    %9 = vector.multi_reduction <maximumf>, %3, %cst [1] : vector<8x48xf32> to vector<8xf32>
    %10 = vector.shape_cast %9 : vector<8xf32> to vector<8x1xf32>
    %11 = vector.broadcast %10 : vector<8x1xf32> to vector<8x48xf32>
    %12 = arith.subf %3, %11 : vector<8x48xf32>
    %13 = math.exp %12 : vector<8x48xf32>
    %cst_4 = arith.constant dense<0.000000e+00> : vector<8xf32>
    %14 = vector.multi_reduction <add>, %13, %cst_4 [1] : vector<8x48xf32> to vector<8xf32>
    %15 = vector.shape_cast %14 : vector<8xf32> to vector<8x1xf32>
    %16 = math.log %15 : vector<8x1xf32>
    %17 = tpu.iota {dimensions = array<i32: 1>} : vector<8x48xi32>
    %c0_i32_5 = arith.constant 0 : i32
    %18 = vector.broadcast %c0_i32_5 : i32 to vector<8x1xi32>
    %19 = arith.cmpi ne, %6, %18 : vector<8x1xi32>
    %20 = arith.extui %19 : vector<8x1xi1> to vector<8x1xi32>
    %21 = arith.sitofp %20 : vector<8x1xi32> to vector<8x1xf32>
    %22 = vector.broadcast %6 : vector<8x1xi32> to vector<8x48xi32>
    %23 = arith.cmpi eq, %17, %22 : vector<8x48xi32>
    %24 = vector.broadcast %19 : vector<8x1xi1> to vector<8x48xi1>
    %25 = arith.andi %23, %24 : vector<8x48xi1>
    %cst_6 = arith.constant 0.000000e+00 : f32
    %26 = vector.broadcast %cst_6 : f32 to vector<8x48xf32>
    %27 = arith.select %25, %12, %26 : vector<8x48xi1>, vector<8x48xf32>
    %28 = arith.mulf %16, %21 : vector<8x1xf32>
    %29 = vector.shape_cast %28 : vector<8x1xf32> to vector<1x8x1xf32>
    %cst_7 = arith.constant dense<0.000000e+00> : vector<1xf32>
    %30 = vector.multi_reduction <add>, %29, %cst_7 [1, 2] : vector<1x8x1xf32> to vector<1xf32>
    %31 = vector.shape_cast %30 : vector<1xf32> to vector<1x1x1xf32>
    %32 = vector.extract %31[0, 0, 0] : f32 from vector<1x1x1xf32>
    %33 = vector.shape_cast %27 : vector<8x48xf32> to vector<1x8x48xf32>
    %cst_8 = arith.constant dense<0.000000e+00> : vector<1xf32>
    %34 = vector.multi_reduction <add>, %33, %cst_8 [1, 2] : vector<1x8x48xf32> to vector<1xf32>
    %35 = vector.shape_cast %34 : vector<1xf32> to vector<1x1x1xf32>
    %36 = vector.extract %35[0, 0, 0] : f32 from vector<1x1x1xf32>
    %37 = arith.subf %32, %36 : f32
    %cst_9 = arith.constant 0.000000e+00 : f32
    %38 = arith.addf %cst_9, %37 : f32
    %39 = vector.shape_cast %21 : vector<8x1xf32> to vector<1x8x1xf32>
    %cst_10 = arith.constant dense<0.000000e+00> : vector<1xf32>
    %40 = vector.multi_reduction <add>, %39, %cst_10 [1, 2] : vector<1x8x1xf32> to vector<1xf32>
    %41 = vector.shape_cast %40 : vector<1xf32> to vector<1x1x1xf32>
    %42 = vector.extract %41[0, 0, 0] : f32 from vector<1x1x1xf32>
    %cst_11 = arith.constant 0.000000e+00 : f32
    %43 = arith.addf %cst_11, %42 : f32
    %c1_i32 = arith.constant 1 : i32
    %44 = vector.broadcast %c1_i32 : i32 to vector<8x1xi32>
    %45 = arith.cmpi eq, %6, %44 : vector<8x1xi32>
    %46 = arith.extui %45 : vector<8x1xi1> to vector<8x1xi32>
    %47 = arith.sitofp %46 : vector<8x1xi32> to vector<8x1xf32>
    %48 = arith.subf %7, %8 : vector<8x2xf32>
    %49 = math.absf %48 : vector<8x2xf32>
    %50 = vector.broadcast %47 : vector<8x1xf32> to vector<8x2xf32>
    %51 = arith.mulf %49, %50 : vector<8x2xf32>
    %52 = vector.shape_cast %51 : vector<8x2xf32> to vector<1x8x2xf32>
    %cst_12 = arith.constant dense<0.000000e+00> : vector<1xf32>
    %53 = vector.multi_reduction <add>, %52, %cst_12 [1, 2] : vector<1x8x2xf32> to vector<1xf32>
    %54 = vector.shape_cast %53 : vector<1xf32> to vector<1x1x1xf32>
    %55 = vector.extract %54[0, 0, 0] : f32 from vector<1x1x1xf32>
    %cst_13 = arith.constant 0.000000e+00 : f32
    %56 = arith.addf %cst_13, %55 : f32
    %57 = vector.shape_cast %47 : vector<8x1xf32> to vector<1x8x1xf32>
    %cst_14 = arith.constant dense<0.000000e+00> : vector<1xf32>
    %58 = vector.multi_reduction <add>, %57, %cst_14 [1, 2] : vector<1x8x1xf32> to vector<1xf32>
    %59 = vector.shape_cast %58 : vector<1xf32> to vector<1x1x1xf32>
    %60 = vector.extract %59[0, 0, 0] : f32 from vector<1x1x1xf32>
    %cst_15 = arith.constant 2.000000e+00 : f32
    %61 = arith.mulf %60, %cst_15 : f32
    %cst_16 = arith.constant 0.000000e+00 : f32
    %62 = arith.addf %cst_16, %61 : f32
    %c0_17 = arith.constant 0 : index
    %63 = memref.load %arg4[%c0_17] : memref<4xf32, #tpu.memory_space<smem>>
    %64 = arith.addf %63, %38 : f32
    %c0_18 = arith.constant 0 : index
    %65 = memref.load %arg4[%c0_18] : memref<4xf32, #tpu.memory_space<smem>>
    memref.store %64, %arg4[%c0_18] : memref<4xf32, #tpu.memory_space<smem>>
    %c1 = arith.constant 1 : index
    %66 = memref.load %arg4[%c1] : memref<4xf32, #tpu.memory_space<smem>>
    %67 = arith.addf %66, %43 : f32
    %c1_19 = arith.constant 1 : index
    %68 = memref.load %arg4[%c1_19] : memref<4xf32, #tpu.memory_space<smem>>
    memref.store %67, %arg4[%c1_19] : memref<4xf32, #tpu.memory_space<smem>>
    %c2 = arith.constant 2 : index
    %69 = memref.load %arg4[%c2] : memref<4xf32, #tpu.memory_space<smem>>
    %70 = arith.addf %69, %56 : f32
    %c2_20 = arith.constant 2 : index
    %71 = memref.load %arg4[%c2_20] : memref<4xf32, #tpu.memory_space<smem>>
    memref.store %70, %arg4[%c2_20] : memref<4xf32, #tpu.memory_space<smem>>
    %c3 = arith.constant 3 : index
    %72 = memref.load %arg4[%c3] : memref<4xf32, #tpu.memory_space<smem>>
    %73 = arith.addf %72, %62 : f32
    %c3_21 = arith.constant 3 : index
    %74 = memref.load %arg4[%c3_21] : memref<4xf32, #tpu.memory_space<smem>>
    memref.store %73, %arg4[%c3_21] : memref<4xf32, #tpu.memory_space<smem>>
    %c5_i32 = arith.constant 5 : i32
    %75 = arith.cmpi eq, %arg0, %c5_i32 : i32
    %76 = arith.extui %75 : i1 to i32
    %c0_i32_22 = arith.constant 0 : i32
    %77 = arith.cmpi ne, %76, %c0_i32_22 : i32
    scf.if %77 {
      %78 = tpu.iota {dimensions = array<i32: 2>} : vector<1x8x128xi32>
      %c0_i32_23 = arith.constant 0 : i32
      %79 = vector.broadcast %c0_i32_23 : i32 to vector<1x8x128xi32>
      %80 = arith.cmpi eq, %78, %79 : vector<1x8x128xi32>
      %c0_24 = arith.constant 0 : index
      %81 = memref.load %arg4[%c0_24] : memref<4xf32, #tpu.memory_space<smem>>
      %cst_25 = arith.constant 0.000000e+00 : f32
      %82 = vector.broadcast %81 : f32 to vector<1x8x128xf32>
      %83 = vector.broadcast %cst_25 : f32 to vector<1x8x128xf32>
      %84 = arith.select %80, %82, %83 : vector<1x8x128xi1>, vector<1x8x128xf32>
      %c1_i32_26 = arith.constant 1 : i32
      %85 = vector.broadcast %c1_i32_26 : i32 to vector<1x8x128xi32>
      %86 = arith.cmpi eq, %78, %85 : vector<1x8x128xi32>
      %c1_27 = arith.constant 1 : index
      %87 = memref.load %arg4[%c1_27] : memref<4xf32, #tpu.memory_space<smem>>
      %cst_28 = arith.constant 0.000000e+00 : f32
      %88 = vector.broadcast %87 : f32 to vector<1x8x128xf32>
      %89 = vector.broadcast %cst_28 : f32 to vector<1x8x128xf32>
      %90 = arith.select %86, %88, %89 : vector<1x8x128xi1>, vector<1x8x128xf32>
      %91 = arith.addf %84, %90 : vector<1x8x128xf32>
      %c2_i32 = arith.constant 2 : i32
      %92 = vector.broadcast %c2_i32 : i32 to vector<1x8x128xi32>
      %93 = arith.cmpi eq, %78, %92 : vector<1x8x128xi32>
      %c2_29 = arith.constant 2 : index
      %94 = memref.load %arg4[%c2_29] : memref<4xf32, #tpu.memory_space<smem>>
      %cst_30 = arith.constant 0.000000e+00 : f32
      %95 = vector.broadcast %94 : f32 to vector<1x8x128xf32>
      %96 = vector.broadcast %cst_30 : f32 to vector<1x8x128xf32>
      %97 = arith.select %93, %95, %96 : vector<1x8x128xi1>, vector<1x8x128xf32>
      %98 = arith.addf %91, %97 : vector<1x8x128xf32>
      %c3_i32 = arith.constant 3 : i32
      %99 = vector.broadcast %c3_i32 : i32 to vector<1x8x128xi32>
      %100 = arith.cmpi eq, %78, %99 : vector<1x8x128xi32>
      %c3_31 = arith.constant 3 : index
      %101 = memref.load %arg4[%c3_31] : memref<4xf32, #tpu.memory_space<smem>>
      %cst_32 = arith.constant 0.000000e+00 : f32
      %102 = vector.broadcast %101 : f32 to vector<1x8x128xf32>
      %103 = vector.broadcast %cst_32 : f32 to vector<1x8x128xf32>
      %104 = arith.select %100, %102, %103 : vector<1x8x128xi1>, vector<1x8x128xf32>
      %105 = arith.addf %98, %104 : vector<1x8x128xf32>
      %c0_33 = arith.constant 0 : index
      %c0_34 = arith.constant 0 : index
      %c0_35 = arith.constant 0 : index
      %106 = vector.load %arg3[%c0_33, %c0_34, %c0_35] : memref<1x8x128xf32, #tpu.memory_space<vmem>>, vector<1x8x128xf32>
      tpu.vector_store %arg3[%c0_33, %c0_34, %c0_35], %105 {strides = array<i32>} : memref<1x8x128xf32, #tpu.memory_space<vmem>>, vector<1x8x128xf32>,
    } else {
    }
    return
  }
  func.func @transform_0(%arg0: i32) -> (i32, i32) {
    %c0_i32 = arith.constant 0 : i32
    %c0_i32_0 = arith.constant 0 : i32
    return %arg0, %c0_i32 : i32, i32
  }
  func.func @transform_1(%arg0: i32) -> (i32, i32) {
    %c0_i32 = arith.constant 0 : i32
    %c0_i32_0 = arith.constant 0 : i32
    return %arg0, %c0_i32 : i32, i32
  }
  func.func @transform_2(%arg0: i32) -> (i32, i32, i32) {
    %c0_i32 = arith.constant 0 : i32
    %c0_i32_0 = arith.constant 0 : i32
    %c0_i32_1 = arith.constant 0 : i32
    %c0_i32_2 = arith.constant 0 : i32
    return %c0_i32, %c0_i32_0, %c0_i32_1 : i32, i32, i32
  }
}

</mosaic_0001>

<llo_original>
// kernel: tpu_custom_call.1
$region0: #{tpu_custom_call.1}
  #allocation0 [shape = 'u32[]', space=smem, size = 0x4, offset = 0x4, fixed_abs, tag = 'smem constant byte address 0x4 - core index']
  #allocation1 [shape = 'u32[144,128]{1,0:T(1,128)}', space=vmem, size = 0x12000, scoped, tag = 'internal scratch']
  #allocation2 [shape = 'f32[4]{0:T(128)}', space=smem, size = 0x200, scoped, tag = 'scratch operand']
  %s0 = inlined_call_operand.vmem [shape: f32[48,48], index: 0, kind: input, shape index: {}]
  %s1 = inlined_call_operand.vmem [shape: f32[48,8], index: 1, kind: input, shape index: {}]
  %s2 = inlined_call_operand.hbm [shape: f32[1,8,128], index: 2, kind: output, shape index: {}]
  %s3 = sld [smem:[#allocation0]]
  $region49: #{tpu_custom_call.1} parent=0
    _
  %s5 = ssub.s32 1, %s3
  %s6 = scalar_select 0, %s5, %s3
  $region1: #{tpu_custom_call.1} parent=0
    #allocation3 [shape = 'u8[4096]{0}', space=vmem, size = 0x1000, scoped, tag = 'output window, operand 0, single buffered']
    #allocation4 [shape = 's32[2]{0}', space=sflag, size = 0x8, scoped, tag = 'scoped memory for tpu_custom_call.1']
    %7 = vsyncpa [#allocation4], 0
    loop: start=0, step=1, limit=8
    $region2: #{tpu_custom_call.1} parent=1 // loop_pre_header
      _
    $region3: #{tpu_custom_call.1} parent=1 // loop_header
      %s9 = sphi 0, %s13
      %p10 = scmp.ge.s32.totalorder %s9, 8
      %s19 = sphi 0, %s21
      %s22 = sphi 0, %s19
      %s23 = sphi 0, %s22
      %s39 = sphi 0, %s23
      %s45 = sphi 0, %s47
      %s48 = sphi 0, %s45
      %s49 = sphi 0, %s48
      %s65 = sphi 0, %s49
      %s69 = sphi 0, %s69
      %s71 = sphi 0, %s69
      %s72 = sphi 0, %s71
      %s86 = sphi 0, %s72
    $region4: #{tpu_custom_call.1} parent=1 // loop_header_branch
      %12 = sbr.rel (%p10) target = $region8
    $region5: #{tpu_custom_call.1} parent=1 // loop_body
      %s14 = ssub.s32 %s9, 1
      %s15 = ssub.s32 %s9, 2
      %s16 = sadd.s32 %s9, 1
      %s17 = ssub.s32 %s9, %s16
      %p18 = scmp.eq.s32.totalorder %s17, 0
      %s20 = sadd.s32 %s19, 1
      %s21 = scalar_select %p18, %s19, %s20
      %p24 = pneg %p18
      %p25 = scmp.eq.s32.totalorder %s9, 5
      %p26 = por %p24, %p25
      %p27 = scmp.ne.s32.totalorder %s19, %s22
      %p28 = scmp.eq.s32.totalorder %s9, 0
      %p29 = por %p27, %p28
      %p30 = scmp.ne.s32.totalorder %s19, %s22
      %p31 = scmp.eq.s32.totalorder %s14, 5
      %p32 = por %p30, %p31
      %p33 = scmp.ne.s32.totalorder %s22, %s23
      %p34 = scmp.eq.s32.totalorder %s14, 0
      %p35 = por %p33, %p34
      %p36 = scmp.ne.s32.totalorder %s22, %s23
      %p37 = scmp.eq.s32.totalorder %s15, 5
      %p38 = por %p36, %p37
      %p40 = scmp.ne.s32.totalorder %s23, %s39
      %p41 = scmp.eq.s32.totalorder %s15, 0
      %p42 = por %p40, %p41
      %s43 = ssub.s32 %s9, %s16
      %p44 = scmp.eq.s32.totalorder %s43, 0
      %s46 = sadd.s32 %s45, 1
      %s47 = scalar_select %p44, %s45, %s46
      %p50 = pneg %p44
      %p51 = scmp.eq.s32.totalorder %s9, 5
      %p52 = por %p50, %p51
      %p53 = scmp.ne.s32.totalorder %s45, %s48
      %p54 = scmp.eq.s32.totalorder %s9, 0
      %p55 = por %p53, %p54
      %p56 = scmp.ne.s32.totalorder %s45, %s48
      %p57 = scmp.eq.s32.totalorder %s14, 5
      %p58 = por %p56, %p57
      %p59 = scmp.ne.s32.totalorder %s48, %s49
      %p60 = scmp.eq.s32.totalorder %s14, 0
      %p61 = por %p59, %p60
      %p62 = scmp.ne.s32.totalorder %s48, %s49
      %p63 = scmp.eq.s32.totalorder %s15, 5
      %p64 = por %p62, %p63
      %p66 = scmp.ne.s32.totalorder %s49, %s65
      %p67 = scmp.eq.s32.totalorder %s15, 0
      %p68 = por %p66, %p67
      %s70 = sadd.s32 %s69, 1
      %p73 = scmp.eq.s32.totalorder %s9, 5
      %p74 = scmp.ne.s32.totalorder %s69, %s71
      %p75 = scmp.eq.s32.totalorder %s9, 0
      %p76 = por %p74, %p75
      %p77 = scmp.ne.s32.totalorder %s69, %s71
      %p78 = scmp.eq.s32.totalorder %s14, 5
      %p79 = por %p77, %p78
      %p80 = scmp.ne.s32.totalorder %s71, %s72
      %p81 = scmp.eq.s32.totalorder %s14, 0
      %p82 = por %p80, %p81
      %p83 = scmp.ne.s32.totalorder %s71, %s72
      %p84 = scmp.eq.s32.totalorder %s15, 5
      %p85 = por %p83, %p84
      %p87 = scmp.ne.s32.totalorder %s72, %s86
      %p88 = scmp.eq.s32.totalorder %s15, 0
      %p89 = por %p87, %p88
      %p90 = scmp.le.s32.totalorder 1, %s9
      %p91 = scmp.lt.s32.totalorder %s9, 7
      %p92 = pnand %p90, %p91
      %p93 = pneg %p92
      // Predicated region
      $region9: #{tpu_custom_call.1} parent=5 // pred_check
        _
      $region10: #{tpu_custom_call.1} parent=5 // pred_check_branch
        %95 = sbr.rel (%p92) target = $region12
      $region11: #{tpu_custom_call.1} parent=5 // pred_region
        %s96 = ssub.s32 %s9, 1
      $region12: #{tpu_custom_call.1} parent=5 // pred_fallthru
        _
      %p97 = scmp.lt.s32.totalorder %s9, 6
      // Predicated region
      $region13: #{tpu_custom_call.1} parent=5 // pred_check
        %p98 = pneg %p97
      $region14: #{tpu_custom_call.1} parent=5 // pred_check_branch
        %100 = sbr.rel (%p98) target = $region16
      $region15: #{tpu_custom_call.1} parent=5 // pred_region
        // Predicated region
        $region17: #{tpu_custom_call.1} parent=15 // pred_check
          %p101 = pneg %p29
        $region18: #{tpu_custom_call.1} parent=15 // pred_check_branch
          %103 = sbr.rel (%p101) target = $region20
        $region19: #{tpu_custom_call.1} parent=15 // pred_region
          %p104 = scmp.lt.s32.totalorder %s9, 5
          %s105 = scalar_select %p104, %s9, 5
          %s106 = smul.addr %s105, 8
          %s107 = scalar_lea.vmem %s0, %s106
        $region20: #{tpu_custom_call.1} parent=15 // pred_fallthru
          _
        // Predicated region
        $region21: #{tpu_custom_call.1} parent=15 // pred_check
          %p108 = pneg %p55
        $region22: #{tpu_custom_call.1} parent=15 // pred_check_branch
          %110 = sbr.rel (%p108) target = $region24
        $region23: #{tpu_custom_call.1} parent=15 // pred_region
          %p111 = scmp.lt.s32.totalorder %s9, 5
          %s112 = scalar_select %p111, %s9, 5
          %s113 = smul.addr %s112, 8
          %s114 = scalar_lea.vmem %s1, %s113
        $region24: #{tpu_custom_call.1} parent=15 // pred_fallthru
          _
      $region16: #{tpu_custom_call.1} parent=5 // pred_fallthru
        _
      %p115 = scmp.le.s32.totalorder 1, %s9
      %p116 = scmp.lt.s32.totalorder %s9, 7
      %p117 = pnand %p115, %p116
      %p118 = pneg %p117
      // Predicated region
      $region25: #{tpu_custom_call.1} parent=5 // pred_check
        _
      $region26: #{tpu_custom_call.1} parent=5 // pred_check_branch
        %120 = sbr.rel (%p117) target = $region28
      $region27: #{tpu_custom_call.1} parent=5 // pred_region
        %s121 = ssub.s32 %s9, 1
        %p122 = scmp.lt.s32.totalorder %s14, 5
        %s123 = scalar_select %p122, %s14, 5
        %s124 = smul.addr %s123, 8
        %s125 = scalar_lea.vmem %s0, %s124
        %p126 = pneg %p35
        %p127 = pneg %p32
        %p128 = scmp.lt.s32.totalorder %s14, 5
        %s129 = scalar_select %p128, %s14, 5
        %s130 = smul.addr %s129, 8
        %s131 = scalar_lea.vmem %s1, %s130
        %p132 = pneg %p61
        %p133 = pneg %p58
        %p134 = pneg %p82
        %p135 = pneg %p79
        %p136 = scmp.lt.s32.totalorder %s14, 5
        %s137 = scalar_select %p136, %s14, 5
        %s138 = smul.addr %s137, 8
        %s139 = scalar_lea.vmem %s0, %s138
        %p140 = scmp.lt.s32.totalorder %s14, 5
        %s141 = scalar_select %p140, %s14, 5
        %s142 = smul.addr %s141, 8
        %s143 = scalar_lea.vmem %s1, %s142
        %p144 = scmp.eq.s32.totalorder %s14, 0
        // Predicated region
        $region29: #{tpu_custom_call.1} parent=27 // pred_check
          %p145 = pneg %p144
        $region30: #{tpu_custom_call.1} parent=27 // pred_check_branch
          %147 = sbr.rel (%p145) target = $region32
        $region31: #{tpu_custom_call.1} parent=27 // pred_region
          %s148 = scalar_lea.smem [#allocation2], 0
          %149 = sst [smem:[%s148]] 0.0
          %s150 = scalar_lea.smem [#allocation2], 1
          %151 = sst [smem:[%s150]] 0.0
          %s152 = scalar_lea.smem [#allocation2], 2
          %153 = sst [smem:[%s152]] 0.0
          %s154 = scalar_lea.smem [#allocation2], 3
          %155 = sst [smem:[%s154]] 0.0
        $region32: #{tpu_custom_call.1} parent=27 // pred_fallthru
          _
        %v156 = vld [vmem:[%s139] sm:$0xff]
        %v157 = vld [vmem:[%s143] sm:$0xff]
        %v158 = vcvt.f32.s32.to.zero.pseudo %v157
        %vm159 = vcmask 392192
        %v160 = vsel %vm159, %v156, -inf
        %161 = vmax.xlane.f32.xlu0 %v160
        %v162 = vpop.xlane.xlu0 %161
        %v163 = vsub.f32 %v156, %v162
        %v164 = vmul.f32 %v163, 1.442695
        %v165 = vpow.pop %v164
        %v166 = vsel %vm159, %v165, 0.0
        %167 = vadd.xlane.f32.xlu0 %v166
        %v168 = vpop.xlane.xlu0 %167
        %v169 = vlog2.pop %v168
        %v170 = vmul.f32 %v169, 0.6931472
        %v171 = vlaneseq
        %v172 = vand.u32 %v171, 127
        %vm173 = vcmp.ne.s32.totalorder %v158, 0
        %v174 = vsel %vm173, 1, 0
        %v175 = vcvt.s32.f32 %v174
        %176 = vset.pattern.permute.xlu0 0
        %177 = vperm.xlu0 %176, %v158
        %v178 = vpop.permute.xlu0 %177
        %vm179 = vcmp.eq.s32.totalorder %v172, %v178
        %180 = vset.pattern.permute.xlu0 0
        %181 = vperm.xlu0 %180, %v174
        %v182 = vpop.permute.xlu0 %181
        %vm183 = vcmp.eq.s32.totalorder %v182, 1
        %vm184 = vmand %vm179, %vm183
        %v185 = vsel %vm184, %v163, 0.0
        %v186 = vmul.f32 %v170, %v175
        %vm187 = vcmask 7168
        %v188 = vsel %vm187, %v186, 0.0
        %189 = vadd.xlane.f32.xlu0 %v188
        %v190 = vpop.xlane.xlu0 %189
        %v191 = vrot.slane %v190, 4
        %v192 = vadd.f32 %v190, %v191
        %v193 = vrot.slane %v192, 2
        %v194 = vadd.f32 %v192, %v193
        %v195 = vrot.slane %v194, 1
        %v196 = vadd.f32 %v194, %v195
        %s197 = vtos %v196
        %v198 = vsel %vm159, %v185, 0.0
        %199 = vadd.xlane.f32.xlu0 %v198
        %v200 = vpop.xlane.xlu0 %199
        %v201 = vrot.slane %v200, 4
        %v202 = vadd.f32 %v200, %v201
        %v203 = vrot.slane %v202, 2
        %v204 = vadd.f32 %v202, %v203
        %v205 = vrot.slane %v204, 1
        %v206 = vadd.f32 %v204, %v205
        %s207 = vtos %v206
        %s208 = ssub.f32 %s197, %s207
        %s209 = sadd.f32 %s208, 0.0
        %v210 = vsel %vm187, %v175, 0.0
        %211 = vadd.xlane.f32.xlu0 %v210
        %v212 = vpop.xlane.xlu0 %211
        %v213 = vrot.slane %v212, 4
        %v214 = vadd.f32 %v212, %v213
        %v215 = vrot.slane %v214, 2
        %v216 = vadd.f32 %v214, %v215
        %v217 = vrot.slane %v216, 1
        %v218 = vadd.f32 %v216, %v217
        %s219 = vtos %v218
        %s220 = sadd.f32 %s219, 0.0
        %vm221 = vcmp.eq.s32.totalorder %v158, 1
        %v222 = vsel %vm221, 1, 0
        %v223 = vcvt.s32.f32 %v222
        %225 = vrot.lane.b32.xlu0 %v157, 126
        %v226 = vpop.permute.xlu0 %225
        %v228 = vsub.f32 %v157, %v226
        %v229 = vand.u32 2147483647, %v228
        %231 = vset.pattern.permute.xlu0 0
        %232 = vperm.xlu0 %231, %v223
        %v233 = vpop.permute.xlu0 %232
        %v235 = vmul.f32 %v229, %v233
        %237 = vrot.lane.b32.xlu0 %v235, 127
        %v238 = vpop.permute.xlu0 %237
        %vm240 = vcmask 15360
        %v241 = vsel %vm240, %v238, 0.0
        %242 = vadd.xlane.f32.xlu0 %v241
        %v243 = vpop.xlane.xlu0 %242
        %v244 = vrot.slane %v243, 4
        %v245 = vadd.f32 %v243, %v244
        %v246 = vrot.slane %v245, 2
        %v247 = vadd.f32 %v245, %v246
        %v248 = vrot.slane %v247, 1
        %v249 = vadd.f32 %v247, %v248
        %s250 = vtos %v249
        %s251 = sadd.f32 %s250, 0.0
        %v252 = vsel %vm187, %v223, 0.0
        %253 = vadd.xlane.f32.xlu0 %v252
        %v254 = vpop.xlane.xlu0 %253
        %v255 = vrot.slane %v254, 4
        %v256 = vadd.f32 %v254, %v255
        %v257 = vrot.slane %v256, 2
        %v258 = vadd.f32 %v256, %v257
        %v259 = vrot.slane %v258, 1
        %v260 = vadd.f32 %v258, %v259
        %s261 = vtos %v260
        %s262 = smul.f32 %s261, 2.0
        %s263 = sadd.f32 %s262, 0.0
        %s264 = sld [smem:[#allocation2]]
        %s265 = sadd.f32 %s264, %s209
        %s266 = scalar_lea.smem [#allocation2], 0
        %267 = sst [smem:[%s266]] %s265
        %s268 = sld [smem:[#allocation2 + $0x1]]
        %s269 = sadd.f32 %s268, %s220
        %s270 = scalar_lea.smem [#allocation2], 1
        %271 = sst [smem:[%s270]] %s269
        %s272 = sld [smem:[#allocation2 + $0x2]]
        %s273 = sadd.f32 %s272, %s251
        %s274 = scalar_lea.smem [#allocation2], 2
        %275 = sst [smem:[%s274]] %s273
        %s276 = sld [smem:[#allocation2 + $0x3]]
        %s277 = sadd.f32 %s276, %s263
        %s278 = scalar_lea.smem [#allocation2], 3
        %279 = sst [smem:[%s278]] %s277
        %p280 = scmp.eq.s32.totalorder %s14, 5
        // Predicated region
        $region33: #{tpu_custom_call.1} parent=27 // pred_check
          %p281 = pneg %p280
        $region34: #{tpu_custom_call.1} parent=27 // pred_check_branch
          %283 = sbr.rel (%p281) target = $region36
        $region35: #{tpu_custom_call.1} parent=27 // pred_region
          %vm284 = vcmp.eq.s32.totalorder %v172, 0
          %s285 = sld [smem:[#allocation2]]
          %v286 = vstv %s285
          %v287 = vsel %vm284, %v286, 0.0
          %vm288 = vcmp.eq.s32.totalorder %v172, 1
          %s289 = sld [smem:[#allocation2 + $0x1]]
          %v290 = vstv %s289
          %v291 = vsel %vm288, %v290, 0.0
          %v292 = vadd.f32 %v287, %v291
          %vm293 = vcmp.eq.s32.totalorder %v172, 2
          %s294 = sld [smem:[#allocation2 + $0x2]]
          %v295 = vstv %s294
          %v296 = vsel %vm293, %v295, 0.0
          %v297 = vadd.f32 %v292, %v296
          %vm298 = vcmp.eq.s32.totalorder %v172, 3
          %s299 = sld [smem:[#allocation2 + $0x3]]
          %v300 = vstv %s299
          %v301 = vsel %vm298, %v300, 0.0
          %v302 = vadd.f32 %v297, %v301
          %303 = vst [vmem:[#allocation3] sm:$0xff] %v302
        $region36: #{tpu_custom_call.1} parent=27 // pred_fallthru
          _
        // Predicated region
        $region37: #{tpu_custom_call.1} parent=27 // pred_check
          %p304 = pneg %p79
        $region38: #{tpu_custom_call.1} parent=27 // pred_check_branch
          %306 = sbr.rel (%p304) target = $region40
        $region39: #{tpu_custom_call.1} parent=27 // pred_region
          %s308 = ssub.s32 128, 128
          %309 = vsyncadd [#allocation4], %s308
          %s311 = sshll.u32 [#allocation3], 4
          %s312 = int_to_ptr.vmem [resolvable:$true] %s311
          %314 = dma.vmem_to_hbm [thread:$0]  %s312, 128, %s2, [#allocation4]
        $region40: #{tpu_custom_call.1} parent=27 // pred_fallthru
          _
        // Predicated region
        $region41: #{tpu_custom_call.1} parent=27 // pred_check
          %p315 = pneg %p79
        $region42: #{tpu_custom_call.1} parent=27 // pred_check_branch
          %317 = sbr.rel (%p315) target = $region44
        $region43: #{tpu_custom_call.1} parent=27 // pred_region
          %318 = dma.done [#allocation4], 128
        $region44: #{tpu_custom_call.1} parent=27 // pred_fallthru
          _
      $region28: #{tpu_custom_call.1} parent=5 // pred_fallthru
        _
      %p319 = scmp.le.s32.totalorder 2, %s9
      // Predicated region
      $region45: #{tpu_custom_call.1} parent=5 // pred_check
        %p320 = pneg %p319
      $region46: #{tpu_custom_call.1} parent=5 // pred_check_branch
        %322 = sbr.rel (%p320) target = $region48
      $region47: #{tpu_custom_call.1} parent=5 // pred_region
        %s323 = ssub.s32 %s9, 2
      $region48: #{tpu_custom_call.1} parent=5 // pred_fallthru
        _
    $region6: #{tpu_custom_call.1} parent=1 // loop_footer
      %s13 = sadd.s32 1, %s9
    $region7: #{tpu_custom_call.1} parent=1 // loop_footer_branch
      %8 = sbr.rel target = $region3
    $region8: #{tpu_custom_call.1} parent=1 // loop_exit
      _
    %324 = vsyncpa [#allocation4], 1
    %s325 = scalar_lea.sflag [#allocation4], 1
    %326 = vsyncpa %s325, 1

</llo_original>
